<compile_context>
chip_gen: v7x
topology: tpu7x:2x2x1
jax: 0.10.0
libtpu: 0.0.40
codegen_flags: <defaults>
</compile_context>

<pallas_src>
import functools

import jax
import jax.numpy as jnp
import numpy as np
from jax.experimental import pallas as pl
from jax.experimental.pallas import tpu as pltpu


def _round_up(a, b):
    return ((a + b - 1) // b) * b


def _pick_vmem_limit_bytes():
    try:
        cap = int(pltpu.get_tpu_info().vmem_capacity_bytes)
    except Exception:
        cap = 128 * 1024 * 1024
    if cap <= 64 * 1024 * 1024:      # v7x: leave headroom in 64 MiB per-TC VMEM
        return 42 * 1024 * 1024
    return 96 * 1024 * 1024          # v5e / v6e: 128 MiB physical


def _nonlocal_kernel(ci, tn, n_true, need_mask, compute_dtype,
                     x_ref,      # (C, TN)    input pixels for one (batch, N tile)
                     wgp_ref,    # (2Ci, C)   fused [g; phi/N] weights (compute dtype)
                     bgp_ref,    # (2Ci, 1)   fused [g; phi/N] biases (f32)
                     wt_ref,     # (Ci, C)    theta weights (compute dtype)
                     bt_ref,     # (Ci, 1)    theta bias (f32)
                     ww_ref,     # (C, Ci)    W weight with folded BN scale (compute dtype)
                     bw_ref,     # (C, 1)     W bias with folded BN scale/shift (f32)
                     out_ref,    # (C, TN)
                     kt_acc):    # (Ci, Ci)   f32 scratch, persists across grid steps
    phase = pl.program_id(1)
    i = pl.program_id(2)

    # ---- Phase 0: accumulate kt = g @ phi^T (contract over spatial dim) ----
    @pl.when(phase == 0)
    def _reduce():
        @pl.when(i == 0)
        def _init():
            kt_acc[...] = jnp.zeros_like(kt_acc)

        xc = x_ref[...].astype(compute_dtype)                             # (C, TN)
        proj = jnp.dot(wgp_ref[...], xc,
                       preferred_element_type=jnp.float32) + bgp_ref[...]  # (2Ci, TN) f32
        if need_mask:
            # Padded columns would otherwise inject bias-only terms into kt.
            col = i * tn + jax.lax.broadcasted_iota(jnp.int32, proj.shape, 1)
            proj = jnp.where(col < n_true, proj, 0.0)
        proj_c = proj.astype(compute_dtype)                                # one cast
        g = proj_c[:ci]                                                    # (Ci, TN)
        ph = proj_c[ci:]                                                   # (Ci, TN)
        kt_acc[...] += jax.lax.dot_general(
            g, ph, (((1,), (1,)), ((), ())),
            preferred_element_type=jnp.float32)                            # (Ci, Ci)

    # ---- Phase 1: theta, apply kt, folded W conv, residual, store ----
    @pl.when(phase == 1)
    def _apply():
        xc = x_ref[...].astype(compute_dtype)                              # (C, TN)
        th = (jnp.dot(wt_ref[...], xc,
                      preferred_element_type=jnp.float32)
              + bt_ref[...]).astype(compute_dtype)                         # (Ci, TN)
        y_t = jnp.dot(kt_acc[...].astype(compute_dtype), th,
                      preferred_element_type=jnp.float32)                  # (Ci, TN)
        wy = jnp.dot(ww_ref[...], y_t.astype(compute_dtype),
                     preferred_element_type=jnp.float32) + bw_ref[...]     # (C, TN)
        # Residual re-reads the resident x tile (no long-lived f32 copy).
        out_ref[...] = (wy + x_ref[...].astype(jnp.float32)).astype(out_ref.dtype)


def non_local_forward(x_nchw, params, eps=1e-5,
                      compute_dtype=jnp.bfloat16, io_dtype=None, tile_n=None):
    """Forward of Non_local.  x_nchw: (B, C, H, W)."""
    B, C, H, W = x_nchw.shape
    Ci = params["wg"].shape[0]          # inter_channels
    N = H * W
    inv_n = 1.0 / float(N)              # true N, even if we pad the lane dim
    if io_dtype is None:
        io_dtype = x_nchw.dtype

    # Fold (inference-form) BatchNorm into the W 1x1 conv.
    bn_scale = params["bn_gamma"] / jnp.sqrt(params["bn_var"] + eps)        # (C,)
    bn_shift = params["bn_beta"] - params["bn_mean"] * bn_scale             # (C,)
    ww_f = params["ww"] * bn_scale[:, None]                                 # (C, Ci)
    bw_f = (params["bw"] * bn_scale + bn_shift).reshape(C, 1)               # (C, 1)

    # Fuse g and (phi / N); theta stays separate (only needed in phase 1).
    w_gp = jnp.concatenate([params["wg"], params["wp"] * inv_n], axis=0)    # (2Ci, C)
    b_gp = jnp.concatenate([params["bg"], params["bp"] * inv_n]).reshape(2 * Ci, 1)
    w_t = params["wt"]                                                      # (Ci, C)
    b_t = params["bt"].reshape(Ci, 1)

    # MXU operands in compute dtype (bf16 default); biases / epilogue stay f32.
    w_gp_c = w_gp.astype(compute_dtype)
    w_t_c = w_t.astype(compute_dtype)
    ww_c = ww_f.astype(compute_dtype)

    vmem_limit = _pick_vmem_limit_bytes()

    # Spatial tile TN (lane dim, multiple of 128), sized to the VMEM budget.
    io_bytes = np.dtype(io_dtype).itemsize
    cd_bytes = np.dtype(compute_dtype).itemsize
    # Rough per-column residency: double-buffered x & out tiles + intermediates.
    per_col = 4 * C * io_bytes + (4 + cd_bytes) * (2 * Ci + C) + 6 * Ci
    if tile_n is None:
        tn = (vmem_limit // 2) // max(per_col, 1)
        tn = max(128, min((tn // 128) * 128, 8192))
    else:
        tn = max(128, _round_up(int(tile_n), 128))
    tn = min(tn, _round_up(N, 128))
    n_pad = _round_up(N, tn)
    nt = n_pad // tn
    need_mask = (n_pad != N)

    # NCHW is already channels-first / spatial-last: flatten H*W, pad lanes.
    x_bcn = x_nchw.reshape(B, C, N).astype(io_dtype)
    if need_mask:
        x_bcn = jnp.pad(x_bcn, ((0, 0), (0, 0), (0, n_pad - N)))

    flops = int(2 * B * n_pad * (3 * Ci * C + 2 * Ci * Ci + C * Ci) + B * C * n_pad)
    bytes_accessed = int(io_bytes * 3 * B * C * n_pad
                         + 4 * (3 * Ci * C + C * Ci + 3 * Ci + 2 * C))

    kern = functools.partial(_nonlocal_kernel, Ci, tn, N, need_mask, compute_dtype)

    out = pl.pallas_call(
        kern,
        out_shape=jax.ShapeDtypeStruct((B, C, n_pad), io_dtype),
        grid_spec=pltpu.PrefetchScalarGridSpec(
            num_scalar_prefetch=0,
            grid=(B, 2, nt),                       # (batch, phase, N tiles)
            in_specs=[
                pl.BlockSpec((None, C, tn), lambda b, p, i: (b, 0, i)),   # x tile
                pl.BlockSpec((2 * Ci, C), lambda b, p, i: (0, 0)),        # [g; phi/N] W
                pl.BlockSpec((2 * Ci, 1), lambda b, p, i: (0, 0)),        # [g; phi/N] b
                pl.BlockSpec((Ci, C), lambda b, p, i: (0, 0)),            # theta W
                pl.BlockSpec((Ci, 1), lambda b, p, i: (0, 0)),            # theta b
                pl.BlockSpec((C, Ci), lambda b, p, i: (0, 0)),            # W (BN folded)
                pl.BlockSpec((C, 1), lambda b, p, i: (0, 0)),             # W bias (BN folded)
            ],
            # Phase 0 pins the output index at tile 0, so nothing is flushed
            # until phase 1 has written real data; phase 1 walks the N tiles.
            out_specs=pl.BlockSpec((None, C, tn), lambda b, p, i: (b, 0, i * p)),
            scratch_shapes=[pltpu.VMEM((Ci, Ci), jnp.float32)],
        ),
        compiler_params=pltpu.CompilerParams(
            dimension_semantics=("parallel", "arbitrary", "arbitrary"),
            vmem_limit_bytes=vmem_limit),
        cost_estimate=pl.CostEstimate(
            flops=flops, transcendentals=0, bytes_accessed=bytes_accessed),
    )(x_bcn, w_gp_c, b_gp, w_t_c, b_t, ww_c, bw_f)

    if need_mask:
        out = out[:, :, :N]
    return out.reshape(B, C, H, W)


def _reference_forward(x_nchw, params, eps=1e-5):
    """Pure-JAX reference mirroring the PyTorch forward exactly (explicit NxN f)."""
    B, C, H, W = x_nchw.shape
    N = H * W
    xf = x_nchw.reshape(B, C, N)

    def conv1x1(w, b, x_bcn):                                      # w: (O, C)
        return jnp.einsum("oc,bcn->bon", w, x_bcn) + b[None, :, None]

    g_x = jnp.transpose(conv1x1(params["wg"], params["bg"], xf), (0, 2, 1))
    theta_x = jnp.transpose(conv1x1(params["wt"], params["bt"], xf), (0, 2, 1))
    phi_x = conv1x1(params["wp"], params["bp"], xf)
    f = jnp.matmul(theta_x, phi_x) / N
    y = jnp.matmul(f, g_x)
    y = jnp.transpose(y, (0, 2, 1))
    wy = conv1x1(params["ww"], params["bw"], y)
    scale = params["bn_gamma"] / jnp.sqrt(params["bn_var"] + eps)
    shift = params["bn_beta"] - params["bn_mean"] * scale
    wy = wy * scale[None, :, None] + shift[None, :, None]
    return (wy + xf).reshape(B, C, H, W)


def init_params(key, in_channels, reduc_ratio=2):
    C = in_channels
    Ci = C // reduc_ratio
    ks = jax.random.split(key, 8)

    def u(k, shape, fan_in):
        bound = 1.0 / np.sqrt(fan_in)
        return jax.random.uniform(k, shape, jnp.float32, -bound, bound)

    return {
        "wg": u(ks[0], (Ci, C), C), "bg": u(ks[1], (Ci,), C),
        "wt": u(ks[2], (Ci, C), C), "bt": u(ks[3], (Ci,), C),
        "wp": u(ks[4], (Ci, C), C), "bp": u(ks[5], (Ci,), C),
        "ww": u(ks[6], (C, Ci), Ci), "bw": u(ks[7], (C,), Ci),
        # BatchNorm2d: module sets weight=0, bias=0; running stats at defaults.
        "bn_gamma": jnp.zeros((C,), jnp.float32),
        "bn_beta": jnp.zeros((C,), jnp.float32),
        "bn_mean": jnp.zeros((C,), jnp.float32),
        "bn_var": jnp.ones((C,), jnp.float32),
    }


if __name__ == "__main__":
    key = jax.random.PRNGKey(0)
    k_x, k_p, k_g, k_b, k_m, k_v, k_x2 = jax.random.split(key, 7)

    B, C, H, W = 2, 4, 16, 16           # in_channels=4, reduc_ratio=2 -> inter=2
    x = jax.random.normal(k_x, (B, C, H, W), jnp.float32)
    params = init_params(k_p, C, reduc_ratio=2)

    # Test 1: exact PyTorch-init semantics (BN gamma=beta=0 -> output == x).
    z = jax.block_until_ready(non_local_forward(x, params))
    z_ref = jax.block_until_ready(_reference_forward(x, params))
    np.testing.assert_allclose(np.asarray(z), np.asarray(z_ref), rtol=1e-5, atol=1e-5)

    # Non-trivial BatchNorm so the attention path is numerically exercised.
    params_nt = dict(params)
    params_nt.update({
        "bn_gamma": jax.random.uniform(k_g, (C,), jnp.float32, 0.5, 1.5),
        "bn_beta": 0.1 * jax.random.normal(k_b, (C,), jnp.float32),
        "bn_mean": 0.1 * jax.random.normal(k_m, (C,), jnp.float32),
        "bn_var": jax.random.uniform(k_v, (C,), jnp.float32, 0.5, 1.5),
    })
    z_ref_nt = jax.block_until_ready(_reference_forward(x, params_nt))

    # Test 2: f32 MXU operands -> tight tolerance.
    z2 = jax.block_until_ready(
        non_local_forward(x, params_nt, compute_dtype=jnp.float32))
    np.testing.assert_allclose(np.asarray(z2), np.asarray(z_ref_nt), rtol=1e-4, atol=1e-5)

    # Test 3: default bf16 MXU operands, f32 accumulation / epilogue.
    z3 = jax.block_until_ready(non_local_forward(x, params_nt))
    np.testing.assert_allclose(np.asarray(z3), np.asarray(z_ref_nt), rtol=5e-2, atol=5e-2)

    # Test 4: multi-tile N path (two-phase kt accumulation across N tiles).
    z4 = jax.block_until_ready(
        non_local_forward(x, params_nt, compute_dtype=jnp.float32, tile_n=128))
    np.testing.assert_allclose(np.asarray(z4), np.asarray(z_ref_nt), rtol=1e-4, atol=1e-5)

    # Test 5: non-multiple-of-128 spatial size -> lane padding + in-kernel mask.
    H2 = W2 = 14
    x2 = jax.random.normal(k_x2, (B, C, H2, W2), jnp.float32)
    z5 = jax.block_until_ready(
        non_local_forward(x2, params_nt, compute_dtype=jnp.float32))
    z5_ref = jax.block_until_ready(_reference_forward(x2, params_nt))
    np.testing.assert_allclose(np.asarray(z5), np.asarray(z5_ref), rtol=1e-4, atol=1e-5)

    # Test 6: bf16 I/O (halves HBM traffic for the HBM-bound v6e regime).
    z6 = jax.block_until_ready(
        non_local_forward(x, params_nt, io_dtype=jnp.bfloat16))
    np.testing.assert_allclose(np.asarray(z6).astype(np.float32),
                               np.asarray(z_ref_nt), rtol=5e-2, atol=5e-2)

    print("KERNEL_OK")
</pallas_src>

<mosaic_0001>
module attributes {stable_mosaic.version = 11 : i64} {
  func.func @_nonlocal_kernel(%arg0: i32, %arg1: i32, %arg2: i32, %arg3: memref<1x4x256xf32, #tpu.memory_space<vmem>>, %arg4: memref<4x4xbf16, #tpu.memory_space<vmem>>, %arg5: memref<4x1xf32, #tpu.memory_space<vmem>>, %arg6: memref<2x4xbf16, #tpu.memory_space<vmem>>, %arg7: memref<2x1xf32, #tpu.memory_space<vmem>>, %arg8: memref<4x2xbf16, #tpu.memory_space<vmem>>, %arg9: memref<4x1xf32, #tpu.memory_space<vmem>>, %arg10: memref<1x4x256xf32, #tpu.memory_space<vmem>>, %arg11: memref<2x2xf32, #tpu.memory_space<vmem>>) attributes {dimension_semantics = [#tpu.dimension_semantics<parallel>, #tpu.dimension_semantics<arbitrary>, #tpu.dimension_semantics<arbitrary>], iteration_bounds = array<i64: 2, 2, 1>, scalar_prefetch = 0 : i64, scratch_operands = 1 : i64, tpu.core_type = #tpu.core_type<tc>, window_params = [{transform_indices = @transform_0, window_bounds = array<i64: 1, 4, 256>}, {pipeline_mode = #tpu.pipeline_mode<synchronous>, transform_indices = @transform_1, window_bounds = array<i64: 4, 4>}, {pipeline_mode = #tpu.pipeline_mode<synchronous>, transform_indices = @transform_2, window_bounds = array<i64: 4, 1>}, {pipeline_mode = #tpu.pipeline_mode<synchronous>, transform_indices = @transform_3, window_bounds = array<i64: 2, 4>}, {pipeline_mode = #tpu.pipeline_mode<synchronous>, transform_indices = @transform_4, window_bounds = array<i64: 2, 1>}, {pipeline_mode = #tpu.pipeline_mode<synchronous>, transform_indices = @transform_5, window_bounds = array<i64: 4, 2>}, {pipeline_mode = #tpu.pipeline_mode<synchronous>, transform_indices = @transform_6, window_bounds = array<i64: 4, 1>}, {transform_indices = @transform_7, window_bounds = array<i64: 1, 4, 256>}]} {
    %c0_i32 = arith.constant 0 : i32
    %0 = arith.cmpi eq, %arg1, %c0_i32 : i32
    %1 = arith.extui %0 : i1 to i32
    %c0_i32_0 = arith.constant 0 : i32
    %2 = arith.cmpi ne, %1, %c0_i32_0 : i32
    scf.if %2 {
      %c0_i32_2 = arith.constant 0 : i32
      %6 = arith.cmpi eq, %arg2, %c0_i32_2 : i32
      %7 = arith.extui %6 : i1 to i32
      %c0_i32_3 = arith.constant 0 : i32
      %8 = arith.cmpi ne, %7, %c0_i32_3 : i32
      scf.if %8 {
        %cst_15 = arith.constant 0.000000e+00 : f32
        %24 = vector.broadcast %cst_15 : f32 to vector<2x2xf32>
        %c0_16 = arith.constant 0 : index
        %c0_17 = arith.constant 0 : index
        %25 = vector.load %arg11[%c0_16, %c0_17] : memref<2x2xf32, #tpu.memory_space<vmem>>, vector<2x2xf32>
        tpu.vector_store %arg11[%c0_16, %c0_17], %24 {strides = array<i32>} : memref<2x2xf32, #tpu.memory_space<vmem>>, vector<2x2xf32>,
      } else {
      }
      %c0 = arith.constant 0 : index
      %c0_4 = arith.constant 0 : index
      %c0_5 = arith.constant 0 : index
      %9 = vector.load %arg3[%c0, %c0_4, %c0_5] : memref<1x4x256xf32, #tpu.memory_space<vmem>>, vector<1x4x256xf32>
      %10 = vector.shape_cast %9 : vector<1x4x256xf32> to vector<4x256xf32>
      %11 = arith.truncf %10 : vector<4x256xf32> to vector<4x256xbf16>
      %c0_6 = arith.constant 0 : index
      %c0_7 = arith.constant 0 : index
      %12 = vector.load %arg4[%c0_6, %c0_7] : memref<4x4xbf16, #tpu.memory_space<vmem>>, vector<4x4xbf16>
      %cst = arith.constant dense<0.000000e+00> : vector<4x256xf32>
      %13 = tpu.matmul %12, %11, %cst {dimension_numbers = #tpu.dot_dimension_numbers<[1], [0], [0], [1], [0, 0, 1, 1], [], []>} : vector<4x4xbf16>, vector<4x256xbf16>, vector<4x256xf32> -> vector<4x256xf32>
      %c0_8 = arith.constant 0 : index
      %c0_9 = arith.constant 0 : index
      %14 = vector.load %arg5[%c0_8, %c0_9] : memref<4x1xf32, #tpu.memory_space<vmem>>, vector<4x1xf32>
      %15 = vector.broadcast %14 : vector<4x1xf32> to vector<4x256xf32>
      %16 = arith.addf %13, %15 : vector<4x256xf32>
      %17 = arith.truncf %16 : vector<4x256xf32> to vector<4x256xbf16>
      %18 = vector.extract_strided_slice %17 {offsets = [0, 0], sizes = [2, 256], strides = [1, 1]} : vector<4x256xbf16> to vector<2x256xbf16>
      %19 = vector.extract_strided_slice %17 {offsets = [2, 0], sizes = [2, 256], strides = [1, 1]} : vector<4x256xbf16> to vector<2x256xbf16>
      %c0_10 = arith.constant 0 : index
      %c0_11 = arith.constant 0 : index
      %20 = vector.load %arg11[%c0_10, %c0_11] : memref<2x2xf32, #tpu.memory_space<vmem>>, vector<2x2xf32>
      %cst_12 = arith.constant dense<0.000000e+00> : vector<2x2xf32>
      %21 = tpu.matmul %18, %19, %cst_12 {dimension_numbers = #tpu.dot_dimension_numbers<[1], [1], [0], [0], [0, 0, 1, 0], [], []>} : vector<2x256xbf16>, vector<2x256xbf16>, vector<2x2xf32> -> vector<2x2xf32>
      %22 = arith.addf %20, %21 : vector<2x2xf32>
      %c0_13 = arith.constant 0 : index
      %c0_14 = arith.constant 0 : index
      %23 = vector.load %arg11[%c0_13, %c0_14] : memref<2x2xf32, #tpu.memory_space<vmem>>, vector<2x2xf32>
      tpu.vector_store %arg11[%c0_13, %c0_14], %22 {strides = array<i32>} : memref<2x2xf32, #tpu.memory_space<vmem>>, vector<2x2xf32>,
    } else {
    }
    %c1_i32 = arith.constant 1 : i32
    %3 = arith.cmpi eq, %arg1, %c1_i32 : i32
    %4 = arith.extui %3 : i1 to i32
    %c0_i32_1 = arith.constant 0 : i32
    %5 = arith.cmpi ne, %4, %c0_i32_1 : i32
    scf.if %5 {
      %c0 = arith.constant 0 : index
      %c0_2 = arith.constant 0 : index
      %c0_3 = arith.constant 0 : index
      %6 = vector.load %arg3[%c0, %c0_2, %c0_3] : memref<1x4x256xf32, #tpu.memory_space<vmem>>, vector<1x4x256xf32>
      %7 = vector.shape_cast %6 : vector<1x4x256xf32> to vector<4x256xf32>
      %8 = arith.truncf %7 : vector<4x256xf32> to vector<4x256xbf16>
      %c0_4 = arith.constant 0 : index
      %c0_5 = arith.constant 0 : index
      %9 = vector.load %arg6[%c0_4, %c0_5] : memref<2x4xbf16, #tpu.memory_space<vmem>>, vector<2x4xbf16>
      %cst = arith.constant dense<0.000000e+00> : vector<2x256xf32>
      %10 = tpu.matmul %9, %8, %cst {dimension_numbers = #tpu.dot_dimension_numbers<[1], [0], [0], [1], [0, 0, 1, 1], [], []>} : vector<2x4xbf16>, vector<4x256xbf16>, vector<2x256xf32> -> vector<2x256xf32>
      %c0_6 = arith.constant 0 : index
      %c0_7 = arith.constant 0 : index
      %11 = vector.load %arg7[%c0_6, %c0_7] : memref<2x1xf32, #tpu.memory_space<vmem>>, vector<2x1xf32>
      %12 = vector.broadcast %11 : vector<2x1xf32> to vector<2x256xf32>
      %13 = arith.addf %10, %12 : vector<2x256xf32>
      %14 = arith.truncf %13 : vector<2x256xf32> to vector<2x256xbf16>
      %c0_8 = arith.constant 0 : index
      %c0_9 = arith.constant 0 : index
      %15 = vector.load %arg11[%c0_8, %c0_9] : memref<2x2xf32, #tpu.memory_space<vmem>>, vector<2x2xf32>
      %16 = arith.truncf %15 : vector<2x2xf32> to vector<2x2xbf16>
      %cst_10 = arith.constant dense<0.000000e+00> : vector<2x256xf32>
      %17 = tpu.matmul %16, %14, %cst_10 {dimension_numbers = #tpu.dot_dimension_numbers<[1], [0], [0], [1], [0, 0, 1, 1], [], []>} : vector<2x2xbf16>, vector<2x256xbf16>, vector<2x256xf32> -> vector<2x256xf32>
      %c0_11 = arith.constant 0 : index
      %c0_12 = arith.constant 0 : index
      %18 = vector.load %arg8[%c0_11, %c0_12] : memref<4x2xbf16, #tpu.memory_space<vmem>>, vector<4x2xbf16>
      %19 = arith.truncf %17 : vector<2x256xf32> to vector<2x256xbf16>
      %cst_13 = arith.constant dense<0.000000e+00> : vector<4x256xf32>
      %20 = tpu.matmul %18, %19, %cst_13 {dimension_numbers = #tpu.dot_dimension_numbers<[1], [0], [0], [1], [0, 0, 1, 1], [], []>} : vector<4x2xbf16>, vector<2x256xbf16>, vector<4x256xf32> -> vector<4x256xf32>
      %c0_14 = arith.constant 0 : index
      %c0_15 = arith.constant 0 : index
      %21 = vector.load %arg9[%c0_14, %c0_15] : memref<4x1xf32, #tpu.memory_space<vmem>>, vector<4x1xf32>
      %22 = vector.broadcast %21 : vector<4x1xf32> to vector<4x256xf32>
      %23 = arith.addf %20, %22 : vector<4x256xf32>
      %c0_16 = arith.constant 0 : index
      %c0_17 = arith.constant 0 : index
      %c0_18 = arith.constant 0 : index
      %24 = vector.load %arg3[%c0_16, %c0_17, %c0_18] : memref<1x4x256xf32, #tpu.memory_space<vmem>>, vector<1x4x256xf32>
      %25 = vector.shape_cast %24 : vector<1x4x256xf32> to vector<4x256xf32>
      %26 = arith.addf %23, %25 : vector<4x256xf32>
      %c0_19 = arith.constant 0 : index
      %c0_20 = arith.constant 0 : index
      %c0_21 = arith.constant 0 : index
      %27 = vector.load %arg10[%c0_19, %c0_20, %c0_21] : memref<1x4x256xf32, #tpu.memory_space<vmem>>, vector<1x4x256xf32>
      %28 = vector.shape_cast %27 : vector<1x4x256xf32> to vector<4x256xf32>
      %29 = vector.shape_cast %26 : vector<4x256xf32> to vector<1x4x256xf32>
      tpu.vector_store %arg10[%c0_19, %c0_20, %c0_21], %29 {strides = array<i32>} : memref<1x4x256xf32, #tpu.memory_space<vmem>>, vector<1x4x256xf32>,
    } else {
    }
    return
  }
  func.func @transform_0(%arg0: i32, %arg1: i32, %arg2: i32) -> (i32, i32, i32) {
    %c0_i32 = arith.constant 0 : i32
    %c0_i32_0 = arith.constant 0 : i32
    return %arg0, %c0_i32, %arg2 : i32, i32, i32
  }
  func.func @transform_1(%arg0: i32, %arg1: i32, %arg2: i32) -> (i32, i32) {
    %c0_i32 = arith.constant 0 : i32
    %c0_i32_0 = arith.constant 0 : i32
    %c0_i32_1 = arith.constant 0 : i32
    return %c0_i32, %c0_i32_0 : i32, i32
  }
  func.func @transform_2(%arg0: i32, %arg1: i32, %arg2: i32) -> (i32, i32) {
    %c0_i32 = arith.constant 0 : i32
    %c0_i32_0 = arith.constant 0 : i32
    %c0_i32_1 = arith.constant 0 : i32
    return %c0_i32, %c0_i32_0 : i32, i32
  }
  func.func @transform_3(%arg0: i32, %arg1: i32, %arg2: i32) -> (i32, i32) {
    %c0_i32 = arith.constant 0 : i32
    %c0_i32_0 = arith.constant 0 : i32
    %c0_i32_1 = arith.constant 0 : i32
    return %c0_i32, %c0_i32_0 : i32, i32
  }
  func.func @transform_4(%arg0: i32, %arg1: i32, %arg2: i32) -> (i32, i32) {
    %c0_i32 = arith.constant 0 : i32
    %c0_i32_0 = arith.constant 0 : i32
    %c0_i32_1 = arith.constant 0 : i32
    return %c0_i32, %c0_i32_0 : i32, i32
  }
  func.func @transform_5(%arg0: i32, %arg1: i32, %arg2: i32) -> (i32, i32) {
    %c0_i32 = arith.constant 0 : i32
    %c0_i32_0 = arith.constant 0 : i32
    %c0_i32_1 = arith.constant 0 : i32
    return %c0_i32, %c0_i32_0 : i32, i32
  }
  func.func @transform_6(%arg0: i32, %arg1: i32, %arg2: i32) -> (i32, i32) {
    %c0_i32 = arith.constant 0 : i32
    %c0_i32_0 = arith.constant 0 : i32
    %c0_i32_1 = arith.constant 0 : i32
    return %c0_i32, %c0_i32_0 : i32, i32
  }
  func.func @transform_7(%arg0: i32, %arg1: i32, %arg2: i32) -> (i32, i32, i32) {
    %0 = arith.muli %arg2, %arg1 : i32
    %c0_i32 = arith.constant 0 : i32
    %c0_i32_0 = arith.constant 0 : i32
    return %arg0, %c0_i32, %0 : i32, i32, i32
  }
}

</mosaic_0001>

<llo_original>
// kernel: tpu_custom_call.1
$region0: #{tpu_custom_call.1}
  #allocation0 [shape = 'u32[]', space=smem, size = 0x4, offset = 0x4, fixed_abs, tag = 'smem constant byte address 0x4 - core index']
  #allocation1 [shape = 'u32[144,128]{1,0:T(1,128)}', space=vmem, size = 0x12000, scoped, tag = 'internal scratch']
  #allocation2 [shape = 'f32[2,2]{1,0:T(2,128)}', space=vmem, size = 0x400, scoped, tag = 'scratch operand']
  %s0 = inlined_call_operand.hbm [shape: f32[2,4,256], index: 0, kind: input, shape index: {}]
  %s1 = inlined_call_operand.hbm [shape: bf16[4,4], index: 1, kind: input, shape index: {}]
  %s2 = inlined_call_operand.hbm [shape: f32[4,1], index: 2, kind: input, shape index: {}]
  %s3 = inlined_call_operand.hbm [shape: bf16[2,4], index: 3, kind: input, shape index: {}]
  %s4 = inlined_call_operand.hbm [shape: f32[2,1], index: 4, kind: input, shape index: {}]
  %s5 = inlined_call_operand.hbm [shape: bf16[4,2], index: 5, kind: input, shape index: {}]
  %s6 = inlined_call_operand.hbm [shape: f32[4,1], index: 6, kind: input, shape index: {}]
  %s7 = inlined_call_operand.hbm [shape: f32[2,4,256], index: 7, kind: output, shape index: {}]
  %s8 = sld [smem:[#allocation0]]
  $region101: #{tpu_custom_call.1} parent=0
    _
  %s10 = ssub.s32 1, %s8
  %s11 = scalar_select 0, %s10, %s8
  $region1: #{tpu_custom_call.1} parent=0
    #allocation3 [shape = 'u8[8192]{0}', space=vmem, size = 0x2000, scoped, tag = 'input window, operand 0']
    #allocation4 [shape = 's32[2]{0}', space=sflag, size = 0x8, scoped, tag = 'scoped memory for tpu_custom_call.1']
    #allocation5 [shape = 's32[2]{0}', space=sflag, size = 0x8, scoped, tag = 'scoped memory for tpu_custom_call.1']
    #allocation6 [shape = 'u8[1024]{0}', space=vmem, size = 0x400, scoped, tag = 'input window, operand 1, single buffered']
    #allocation7 [shape = 's32[1]{0}', space=sflag, size = 0x4, scoped, tag = 'scoped memory for tpu_custom_call.1']
    #allocation8 [shape = 'u8[2048]{0}', space=vmem, size = 0x800, scoped, tag = 'input window, operand 2, single buffered']
    #allocation9 [shape = 'u8[512]{0}', space=vmem, size = 0x400, scoped, tag = 'input window, operand 3, single buffered']
    #allocation10 [shape = 's32[1]{0}', space=sflag, size = 0x4, scoped, tag = 'scoped memory for tpu_custom_call.1']
    #allocation11 [shape = 'u8[1024]{0}', space=vmem, size = 0x400, scoped, tag = 'input window, operand 4, single buffered']
    #allocation12 [shape = 'u8[1024]{0}', space=vmem, size = 0x400, scoped, tag = 'input window, operand 5, single buffered']
    #allocation13 [shape = 's32[1]{0}', space=sflag, size = 0x4, scoped, tag = 'scoped memory for tpu_custom_call.1']
    #allocation14 [shape = 'u8[2048]{0}', space=vmem, size = 0x800, scoped, tag = 'input window, operand 6, single buffered']
    #allocation15 [shape = 'u8[8192]{0}', space=vmem, size = 0x2000, scoped, tag = 'output window, operand 0']
    %12 = vsyncpa [#allocation4], 0
    %s13 = scalar_lea.sflag [#allocation4], 1
    %14 = vsyncpa %s13, 0
    %15 = vsyncpa [#allocation7], 0
    %16 = vsyncpa [#allocation10], 0
    %17 = vsyncpa [#allocation13], 0
    %18 = vsyncpa [#allocation5], 0
    %s19 = scalar_lea.sflag [#allocation5], 1
    %20 = vsyncpa %s19, 0
    loop: start=0, step=1, limit=6
    $region2: #{tpu_custom_call.1} parent=1 // loop_pre_header
      _
    $region3: #{tpu_custom_call.1} parent=1 // loop_header
      %s22 = sphi 0, %s26
      %p23 = scmp.ge.s32.totalorder %s22, 6
      %s29 = sphi 0, %s48
      %s30 = sphi 0, %s44
      %s31 = sphi 0, %s40
      %s32 = sphi 0, %s29
      %s33 = sphi 0, %s30
      %s34 = sphi 0, %s31
      %s35 = sphi 0, %s32
      %s36 = sphi 0, %s33
      %s37 = sphi 0, %s34
      %s53 = sphi 0, %s55
      %s56 = sphi 0, %s53
      %s57 = sphi 0, %s56
      %s73 = sphi 0, %s57
      %s77 = sphi 0, %s77
      %s79 = sphi 0, %s77
      %s80 = sphi 0, %s79
      %s94 = sphi 0, %s80
      %s98 = sphi 0, %s98
      %s100 = sphi 0, %s98
      %s101 = sphi 0, %s100
      %s115 = sphi 0, %s101
      %s119 = sphi 0, %s119
      %s121 = sphi 0, %s119
      %s122 = sphi 0, %s121
      %s136 = sphi 0, %s122
      %s140 = sphi 0, %s140
      %s142 = sphi 0, %s140
      %s143 = sphi 0, %s142
      %s157 = sphi 0, %s143
      %s161 = sphi 0, %s161
      %s163 = sphi 0, %s161
      %s164 = sphi 0, %s163
      %s178 = sphi 0, %s164
      %s182 = sphi 0, %s182
      %s184 = sphi 0, %s182
      %s185 = sphi 0, %s184
      %s199 = sphi 0, %s185
      %s209 = sphi 0, %s211
      %s212 = sphi 0, %s209
      %s213 = sphi 0, %s212
      %s229 = sphi 0, %s213
    $region4: #{tpu_custom_call.1} parent=1 // loop_header_branch
      %25 = sbr.rel (%p23) target = $region8
    $region5: #{tpu_custom_call.1} parent=1 // loop_body
      %s27 = ssub.s32 %s22, 1
      %s28 = ssub.s32 %s22, 2
      %s38 = sadd.s32 1, %s31
      %p39 = scmp.ge.s32.totalorder %s38, 1
      %s40 = scalar_select %p39, 0, %s38
      %s41 = sadd.s32 1, %s30
      %s42 = scalar_select %p39, %s41, %s30
      %p43 = scmp.ge.s32.totalorder %s42, 2
      %s44 = scalar_select %p43, 0, %s42
      %s45 = sadd.s32 1, %s29
      %s46 = scalar_select %p43, %s45, %s29
      %p47 = scmp.ge.s32.totalorder %s46, 2
      %s48 = scalar_select %p47, 0, %s46
      %s49 = ssub.s32 %s29, %s48
      %s50 = ssub.s32 %s31, %s40
      %s51 = sor.u32 %s49, %s50
      %p52 = scmp.eq.s32.totalorder %s51, 0
      %s54 = sadd.s32 %s53, 1
      %s55 = scalar_select %p52, %s53, %s54
      %p58 = pneg %p52
      %p59 = scmp.eq.s32.totalorder %s22, 3
      %p60 = por %p58, %p59
      %p61 = scmp.ne.s32.totalorder %s53, %s56
      %p62 = scmp.eq.s32.totalorder %s22, 0
      %p63 = por %p61, %p62
      %p64 = scmp.ne.s32.totalorder %s53, %s56
      %p65 = scmp.eq.s32.totalorder %s27, 3
      %p66 = por %p64, %p65
      %p67 = scmp.ne.s32.totalorder %s56, %s57
      %p68 = scmp.eq.s32.totalorder %s27, 0
      %p69 = por %p67, %p68
      %p70 = scmp.ne.s32.totalorder %s56, %s57
      %p71 = scmp.eq.s32.totalorder %s28, 3
      %p72 = por %p70, %p71
      %p74 = scmp.ne.s32.totalorder %s57, %s73
      %p75 = scmp.eq.s32.totalorder %s28, 0
      %p76 = por %p74, %p75
      %s78 = sadd.s32 %s77, 1
      %p81 = scmp.eq.s32.totalorder %s22, 3
      %p82 = scmp.ne.s32.totalorder %s77, %s79
      %p83 = scmp.eq.s32.totalorder %s22, 0
      %p84 = por %p82, %p83
      %p85 = scmp.ne.s32.totalorder %s77, %s79
      %p86 = scmp.eq.s32.totalorder %s27, 3
      %p87 = por %p85, %p86
      %p88 = scmp.ne.s32.totalorder %s79, %s80
      %p89 = scmp.eq.s32.totalorder %s27, 0
      %p90 = por %p88, %p89
      %p91 = scmp.ne.s32.totalorder %s79, %s80
      %p92 = scmp.eq.s32.totalorder %s28, 3
      %p93 = por %p91, %p92
      %p95 = scmp.ne.s32.totalorder %s80, %s94
      %p96 = scmp.eq.s32.totalorder %s28, 0
      %p97 = por %p95, %p96
      %s99 = sadd.s32 %s98, 1
      %p102 = scmp.eq.s32.totalorder %s22, 3
      %p103 = scmp.ne.s32.totalorder %s98, %s100
      %p104 = scmp.eq.s32.totalorder %s22, 0
      %p105 = por %p103, %p104
      %p106 = scmp.ne.s32.totalorder %s98, %s100
      %p107 = scmp.eq.s32.totalorder %s27, 3
      %p108 = por %p106, %p107
      %p109 = scmp.ne.s32.totalorder %s100, %s101
      %p110 = scmp.eq.s32.totalorder %s27, 0
      %p111 = por %p109, %p110
      %p112 = scmp.ne.s32.totalorder %s100, %s101
      %p113 = scmp.eq.s32.totalorder %s28, 3
      %p114 = por %p112, %p113
      %p116 = scmp.ne.s32.totalorder %s101, %s115
      %p117 = scmp.eq.s32.totalorder %s28, 0
      %p118 = por %p116, %p117
      %s120 = sadd.s32 %s119, 1
      %p123 = scmp.eq.s32.totalorder %s22, 3
      %p124 = scmp.ne.s32.totalorder %s119, %s121
      %p125 = scmp.eq.s32.totalorder %s22, 0
      %p126 = por %p124, %p125
      %p127 = scmp.ne.s32.totalorder %s119, %s121
      %p128 = scmp.eq.s32.totalorder %s27, 3
      %p129 = por %p127, %p128
      %p130 = scmp.ne.s32.totalorder %s121, %s122
      %p131 = scmp.eq.s32.totalorder %s27, 0
      %p132 = por %p130, %p131
      %p133 = scmp.ne.s32.totalorder %s121, %s122
      %p134 = scmp.eq.s32.totalorder %s28, 3
      %p135 = por %p133, %p134
      %p137 = scmp.ne.s32.totalorder %s122, %s136
      %p138 = scmp.eq.s32.totalorder %s28, 0
      %p139 = por %p137, %p138
      %s141 = sadd.s32 %s140, 1
      %p144 = scmp.eq.s32.totalorder %s22, 3
      %p145 = scmp.ne.s32.totalorder %s140, %s142
      %p146 = scmp.eq.s32.totalorder %s22, 0
      %p147 = por %p145, %p146
      %p148 = scmp.ne.s32.totalorder %s140, %s142
      %p149 = scmp.eq.s32.totalorder %s27, 3
      %p150 = por %p148, %p149
      %p151 = scmp.ne.s32.totalorder %s142, %s143
      %p152 = scmp.eq.s32.totalorder %s27, 0
      %p153 = por %p151, %p152
      %p154 = scmp.ne.s32.totalorder %s142, %s143
      %p155 = scmp.eq.s32.totalorder %s28, 3
      %p156 = por %p154, %p155
      %p158 = scmp.ne.s32.totalorder %s143, %s157
      %p159 = scmp.eq.s32.totalorder %s28, 0
      %p160 = por %p158, %p159
      %s162 = sadd.s32 %s161, 1
      %p165 = scmp.eq.s32.totalorder %s22, 3
      %p166 = scmp.ne.s32.totalorder %s161, %s163
      %p167 = scmp.eq.s32.totalorder %s22, 0
      %p168 = por %p166, %p167
      %p169 = scmp.ne.s32.totalorder %s161, %s163
      %p170 = scmp.eq.s32.totalorder %s27, 3
      %p171 = por %p169, %p170
      %p172 = scmp.ne.s32.totalorder %s163, %s164
      %p173 = scmp.eq.s32.totalorder %s27, 0
      %p174 = por %p172, %p173
      %p175 = scmp.ne.s32.totalorder %s163, %s164
      %p176 = scmp.eq.s32.totalorder %s28, 3
      %p177 = por %p175, %p176
      %p179 = scmp.ne.s32.totalorder %s164, %s178
      %p180 = scmp.eq.s32.totalorder %s28, 0
      %p181 = por %p179, %p180
      %s183 = sadd.s32 %s182, 1
      %p186 = scmp.eq.s32.totalorder %s22, 3
      %p187 = scmp.ne.s32.totalorder %s182, %s184
      %p188 = scmp.eq.s32.totalorder %s22, 0
      %p189 = por %p187, %p188
      %p190 = scmp.ne.s32.totalorder %s182, %s184
      %p191 = scmp.eq.s32.totalorder %s27, 3
      %p192 = por %p190, %p191
      %p193 = scmp.ne.s32.totalorder %s184, %s185
      %p194 = scmp.eq.s32.totalorder %s27, 0
      %p195 = por %p193, %p194
      %p196 = scmp.ne.s32.totalorder %s184, %s185
      %p197 = scmp.eq.s32.totalorder %s28, 3
      %p198 = por %p196, %p197
      %p200 = scmp.ne.s32.totalorder %s185, %s199
      %p201 = scmp.eq.s32.totalorder %s28, 0
      %p202 = por %p200, %p201
      %s203 = smul.u32 %s31, %s30
      %s204 = smul.u32 %s40, %s44
      %s205 = ssub.s32 %s29, %s48
      %s206 = ssub.s32 %s203, %s204
      %s207 = sor.u32 %s205, %s206
      %p208 = scmp.eq.s32.totalorder %s207, 0
      %s210 = sadd.s32 %s209, 1
      %s211 = scalar_select %p208, %s209, %s210
      %p214 = pneg %p208
      %p215 = scmp.eq.s32.totalorder %s22, 3
      %p216 = por %p214, %p215
      %p217 = scmp.ne.s32.totalorder %s209, %s212
      %p218 = scmp.eq.s32.totalorder %s22, 0
      %p219 = por %p217, %p218
      %p220 = scmp.ne.s32.totalorder %s209, %s212
      %p221 = scmp.eq.s32.totalorder %s27, 3
      %p222 = por %p220, %p221
      %p223 = scmp.ne.s32.totalorder %s212, %s213
      %p224 = scmp.eq.s32.totalorder %s27, 0
      %p225 = por %p223, %p224
      %p226 = scmp.ne.s32.totalorder %s212, %s213
      %p227 = scmp.eq.s32.totalorder %s28, 3
      %p228 = por %p226, %p227
      %p230 = scmp.ne.s32.totalorder %s213, %s229
      %p231 = scmp.eq.s32.totalorder %s28, 0
      %p232 = por %p230, %p231
      %p233 = scmp.le.s32.totalorder 1, %s22
      %p234 = scmp.lt.s32.totalorder %s22, 5
      %p235 = pnand %p233, %p234
      %p236 = pneg %p235
      // Predicated region
      $region9: #{tpu_custom_call.1} parent=5 // pred_check
        _
      $region10: #{tpu_custom_call.1} parent=5 // pred_check_branch
        %238 = sbr.rel (%p235) target = $region12
      $region11: #{tpu_custom_call.1} parent=5 // pred_region
        %s239 = ssub.s32 %s22, 1
        // Predicated region
        $region13: #{tpu_custom_call.1} parent=11 // pred_check
          %p240 = pneg %p90
        $region14: #{tpu_custom_call.1} parent=11 // pred_check_branch
          %242 = sbr.rel (%p240) target = $region16
        $region15: #{tpu_custom_call.1} parent=11 // pred_region
          %s244 = ssub.s32 32, 32
          %245 = vsyncadd [#allocation7], %s244
          %s247 = sshll.u32 [#allocation6], 4
          %s248 = int_to_ptr.vmem [resolvable:$true] %s247
          %250 = dma.hbm_to_vmem [thread:$0]  %s1, 32, %s248, [#allocation7]
        $region16: #{tpu_custom_call.1} parent=11 // pred_fallthru
          _
        // Predicated region
        $region17: #{tpu_custom_call.1} parent=11 // pred_check
          %p251 = pneg %p111
        $region18: #{tpu_custom_call.1} parent=11 // pred_check_branch
          %253 = sbr.rel (%p251) target = $region20
        $region19: #{tpu_custom_call.1} parent=11 // pred_region
          %s255 = ssub.s32 64, 64
          %256 = vsyncadd [#allocation7], %s255
          %s258 = sshll.u32 [#allocation8], 4
          %s259 = int_to_ptr.vmem [resolvable:$true] %s258
          %261 = dma.hbm_to_vmem [thread:$0]  %s2, 64, %s259, [#allocation7]
        $region20: #{tpu_custom_call.1} parent=11 // pred_fallthru
          _
        // Predicated region
        $region21: #{tpu_custom_call.1} parent=11 // pred_check
          %p262 = pneg %p132
        $region22: #{tpu_custom_call.1} parent=11 // pred_check_branch
          %264 = sbr.rel (%p262) target = $region24
        $region23: #{tpu_custom_call.1} parent=11 // pred_region
          %s266 = ssub.s32 16, 16
          %267 = vsyncadd [#allocation10], %s266
          %s269 = sshll.u32 [#allocation9], 4
          %s270 = int_to_ptr.vmem [resolvable:$true] %s269
          %272 = dma.hbm_to_vmem [thread:$0]  %s3, 16, %s270, [#allocation10]
        $region24: #{tpu_custom_call.1} parent=11 // pred_fallthru
          _
        // Predicated region
        $region25: #{tpu_custom_call.1} parent=11 // pred_check
          %p273 = pneg %p153
        $region26: #{tpu_custom_call.1} parent=11 // pred_check_branch
          %275 = sbr.rel (%p273) target = $region28
        $region27: #{tpu_custom_call.1} parent=11 // pred_region
          %s277 = ssub.s32 32, 32
          %278 = vsyncadd [#allocation10], %s277
          %s280 = sshll.u32 [#allocation11], 4
          %s281 = int_to_ptr.vmem [resolvable:$true] %s280
          %283 = dma.hbm_to_vmem [thread:$0]  %s4, 32, %s281, [#allocation10]
        $region28: #{tpu_custom_call.1} parent=11 // pred_fallthru
          _
        // Predicated region
        $region29: #{tpu_custom_call.1} parent=11 // pred_check
          %p284 = pneg %p174
        $region30: #{tpu_custom_call.1} parent=11 // pred_check_branch
          %286 = sbr.rel (%p284) target = $region32
        $region31: #{tpu_custom_call.1} parent=11 // pred_region
          %s288 = ssub.s32 32, 32
          %289 = vsyncadd [#allocation13], %s288
          %s291 = sshll.u32 [#allocation12], 4
          %s292 = int_to_ptr.vmem [resolvable:$true] %s291
          %294 = dma.hbm_to_vmem [thread:$0]  %s5, 32, %s292, [#allocation13]
        $region32: #{tpu_custom_call.1} parent=11 // pred_fallthru
          _
        // Predicated region
        $region33: #{tpu_custom_call.1} parent=11 // pred_check
          %p295 = pneg %p195
        $region34: #{tpu_custom_call.1} parent=11 // pred_check_branch
          %297 = sbr.rel (%p295) target = $region36
        $region35: #{tpu_custom_call.1} parent=11 // pred_region
          %s299 = ssub.s32 64, 64
          %300 = vsyncadd [#allocation13], %s299
          %s302 = sshll.u32 [#allocation14], 4
          %s303 = int_to_ptr.vmem [resolvable:$true] %s302
          %305 = dma.hbm_to_vmem [thread:$0]  %s6, 64, %s303, [#allocation13]
        $region36: #{tpu_custom_call.1} parent=11 // pred_fallthru
          _
      $region12: #{tpu_custom_call.1} parent=5 // pred_fallthru
        _
      %p306 = scmp.lt.s32.totalorder %s22, 4
      // Predicated region
      $region37: #{tpu_custom_call.1} parent=5 // pred_check
        %p307 = pneg %p306
      $region38: #{tpu_custom_call.1} parent=5 // pred_check_branch
        %309 = sbr.rel (%p307) target = $region40
      $region39: #{tpu_custom_call.1} parent=5 // pred_region
        // Predicated region
        $region41: #{tpu_custom_call.1} parent=39 // pred_check
          %p310 = pneg %p63
        $region42: #{tpu_custom_call.1} parent=39 // pred_check_branch
          %312 = sbr.rel (%p310) target = $region44
        $region43: #{tpu_custom_call.1} parent=39 // pred_region
          %s313 = sand.u32 %s53, 1
          %s314 = scalar_lea.sflag [#allocation4], %s313
          %s315 = sand.u32 %s53, 1
          %s316 = smul.addr %s315, 8
          %s317 = scalar_lea.vmem [#allocation3], %s316
          %s318 = smul.u32 2, %s31
          %s320 = ssub.s32 128, 128
          %321 = vsyncadd %s314, %s320
          %s322 = smul.addr %s29, 2
          %s323 = sadd.s32 %s318, %s322
          %s324 = smul.addr %s323, 64
          %s325 = scalar_lea.hbm %s0, %s324
          %s327 = sshll.u32 %s317, 4
          %s328 = int_to_ptr.vmem [resolvable:$true] %s327
          %330 = dma.hbm_to_vmem [thread:$0]  %s325, 128, %s328, %s314
        $region44: #{tpu_custom_call.1} parent=39 // pred_fallthru
          _
      $region40: #{tpu_custom_call.1} parent=5 // pred_fallthru
        _
      %p331 = scmp.le.s32.totalorder 1, %s22
      %p332 = scmp.lt.s32.totalorder %s22, 5
      %p333 = pnand %p331, %p332
      %p334 = pneg %p333
      // Predicated region
      $region45: #{tpu_custom_call.1} parent=5 // pred_check
        _
      $region46: #{tpu_custom_call.1} parent=5 // pred_check_branch
        %336 = sbr.rel (%p333) target = $region48
      $region47: #{tpu_custom_call.1} parent=5 // pred_region
        %s337 = ssub.s32 %s22, 1
        %s338 = sand.u32 %s56, 1
        %s339 = scalar_lea.sflag [#allocation4], %s338
        %s340 = sand.u32 %s56, 1
        %s341 = smul.addr %s340, 8
        %s342 = scalar_lea.vmem [#allocation3], %s341
        // Predicated region
        $region49: #{tpu_custom_call.1} parent=47 // pred_check
          %p343 = pneg %p69
        $region50: #{tpu_custom_call.1} parent=47 // pred_check_branch
          %345 = sbr.rel (%p343) target = $region52
        $region51: #{tpu_custom_call.1} parent=47 // pred_region
          %346 = dma.done %s339, 128
        $region52: #{tpu_custom_call.1} parent=47 // pred_fallthru
          _
        // Predicated region
        $region53: #{tpu_custom_call.1} parent=47 // pred_check
          %p347 = pneg %p90
        $region54: #{tpu_custom_call.1} parent=47 // pred_check_branch
          %349 = sbr.rel (%p347) target = $region56
        $region55: #{tpu_custom_call.1} parent=47 // pred_region
          %350 = dma.done [#allocation7], 32
        $region56: #{tpu_custom_call.1} parent=47 // pred_fallthru
          _
        // Predicated region
        $region57: #{tpu_custom_call.1} parent=47 // pred_check
          %p351 = pneg %p111
        $region58: #{tpu_custom_call.1} parent=47 // pred_check_branch
          %353 = sbr.rel (%p351) target = $region60
        $region59: #{tpu_custom_call.1} parent=47 // pred_region
          %354 = dma.done [#allocation7], 64
        $region60: #{tpu_custom_call.1} parent=47 // pred_fallthru
          _
        // Predicated region
        $region61: #{tpu_custom_call.1} parent=47 // pred_check
          %p355 = pneg %p132
        $region62: #{tpu_custom_call.1} parent=47 // pred_check_branch
          %357 = sbr.rel (%p355) target = $region64
        $region63: #{tpu_custom_call.1} parent=47 // pred_region
          %358 = dma.done [#allocation10], 16
        $region64: #{tpu_custom_call.1} parent=47 // pred_fallthru
          _
        // Predicated region
        $region65: #{tpu_custom_call.1} parent=47 // pred_check
          %p359 = pneg %p153
        $region66: #{tpu_custom_call.1} parent=47 // pred_check_branch
          %361 = sbr.rel (%p359) target = $region68
        $region67: #{tpu_custom_call.1} parent=47 // pred_region
          %362 = dma.done [#allocation10], 32
        $region68: #{tpu_custom_call.1} parent=47 // pred_fallthru
          _
        // Predicated region
        $region69: #{tpu_custom_call.1} parent=47 // pred_check
          %p363 = pneg %p174
        $region70: #{tpu_custom_call.1} parent=47 // pred_check_branch
          %365 = sbr.rel (%p363) target = $region72
        $region71: #{tpu_custom_call.1} parent=47 // pred_region
          %366 = dma.done [#allocation13], 32
        $region72: #{tpu_custom_call.1} parent=47 // pred_fallthru
          _
        // Predicated region
        $region73: #{tpu_custom_call.1} parent=47 // pred_check
          %p367 = pneg %p195
        $region74: #{tpu_custom_call.1} parent=47 // pred_check_branch
          %369 = sbr.rel (%p367) target = $region76
        $region75: #{tpu_custom_call.1} parent=47 // pred_region
          %370 = dma.done [#allocation13], 64
        $region76: #{tpu_custom_call.1} parent=47 // pred_fallthru
          _
        %s371 = sand.u32 %s56, 1
        %s372 = scalar_lea.sflag [#allocation4], %s371
        %s373 = sand.u32 %s56, 1
        %s374 = smul.addr %s373, 8
        %s375 = scalar_lea.vmem [#allocation3], %s374
        %p376 = pneg %p69
        %p377 = pneg %p66
        %p378 = pneg %p90
        %p379 = pneg %p87
        %p380 = pneg %p111
        %p381 = pneg %p108
        %p382 = pneg %p132
        %p383 = pneg %p129
        %p384 = pneg %p153
        %p385 = pneg %p150
        %p386 = pneg %p174
        %p387 = pneg %p171
        %p388 = pneg %p195
        %p389 = pneg %p192
        %p390 = pneg %p225
        %p391 = pneg %p222
        %s392 = sand.u32 %s212, 1
        %s393 = scalar_lea.sflag [#allocation5], %s392
        %s394 = sand.u32 %s212, 1
        %s395 = smul.addr %s394, 8
        %s396 = scalar_lea.vmem [#allocation15], %s395
        %s397 = smul.u32 2, %s34
        %s398 = smul.u32 %s34, %s33
        %s399 = smul.u32 2, %s398
        %p401 = scmp.eq.s32.totalorder %s33, 0
        // Predicated region
        $region77: #{tpu_custom_call.1} parent=47 // pred_check
          %p402 = pneg %p401
        $region78: #{tpu_custom_call.1} parent=47 // pred_check_branch
          %404 = sbr.rel (%p402) target = $region80
        $region79: #{tpu_custom_call.1} parent=47 // pred_region
          %p405 = scmp.eq.s32.totalorder %s34, 0
          // Predicated region
          $region81: #{tpu_custom_call.1} parent=79 // pred_check
            %p406 = pneg %p405
          $region82: #{tpu_custom_call.1} parent=79 // pred_check_branch
            %408 = sbr.rel (%p406) target = $region84
          $region83: #{tpu_custom_call.1} parent=79 // pred_region
            %vm409 = vcmask 9216
            %410 = vst.msk [vmem:[#allocation2] sm:$0x3] %vm409, 0.0
          $region84: #{tpu_custom_call.1} parent=79 // pred_fallthru
            _
          %v411 = vld [vmem:[%s342] sm:$0xff]
          %v413 = vcombine.high %v411, %v411
          %v415 = vpack.c.bf16 %v411, %v411
          %v416 = vpack.c.bf16 %v413, %v413
          %v417 = vld [vmem:[#allocation6] sm:$0x3]
          %v418 = vld [vmem:[#allocation8] sm:$0xf]
          %420 = vset.pattern.permute.xlu0 0
          %421 = vperm.xlu0 %420, %v418
          %v422 = vpop.permute.xlu0 %421
          %vm424 = vcmask 31744
          %v426 = vsel %vm424, %v417, 0
          %vm428 = vcmask 1041408
          %v430 = vsel %vm428, %v415, 0
          %v433 = vsel %vm428, %v416, 0
          %435 = vmatprep.subr.bf16.mxu0 %v433
          %436 = vmatpush1.bf16.msra.mxu0 %v430
          %437 = vmatprep.subr.bf16.mxu0 0
          %438 = vmatpush1.bf16.msra.mxu0 0
          %439 = vmatprep.subr.bf16.mxu0 0
          %440 = vmatpush1.bf16.msra.mxu0 0
          %441 = vmatprep.subr.bf16.mxu0 0
          %442 = vmatpush1.bf16.msra.mxu0 0
          %443 = vmatprep.subr.bf16.mxu0 0
          %444 = vmatpush1.bf16.msra.mxu0 0
          %445 = vmatprep.subr.bf16.mxu0 0
          %446 = vmatpush1.bf16.msra.mxu0 0
          %447 = vmatprep.subr.bf16.mxu0 0
          %448 = vmatpush1.bf16.msra.mxu0 0
          %449 = vmatprep.subr.bf16.mxu0 0
          %450 = vmatpush1.bf16.msra.mxu0 0
          %451 = vmatprep.subr.bf16.mxu0 0
          %452 = vmatpush1.bf16.msra.mxu0 0
          %453 = vmatprep.subr.bf16.mxu0 0
          %454 = vmatpush1.bf16.msra.mxu0 0
          %455 = vmatprep.subr.bf16.mxu0 0
          %456 = vmatpush1.bf16.msra.mxu0 0
          %457 = vmatprep.subr.bf16.mxu0 0
          %458 = vmatpush1.bf16.msra.mxu0 0
          %459 = vmatprep.subr.bf16.mxu0 0
          %460 = vmatpush1.bf16.msra.mxu0 0
          %461 = vmatprep.subr.bf16.mxu0 0
          %462 = vmatpush1.bf16.msra.mxu0 0
          %463 = vmatprep.subr.bf16.mxu0 0
          %464 = vmatpush1.bf16.msra.mxu0 0
          %465 = vmatprep.subr.bf16.mxu0 0
          %466 = vmatpush1.bf16.msra.mxu0 0
          %467 = vmatprep.mubr.bf16.mxu0 0
          %468 = vmatmul.mubr.bf16.gmra.mrb[0].mxu0 %v426
          %v469 = vpop.f32.mrb[0].mxu0
          %v470 = vadd.f32 %v422, %v469
          %v471 = vpop.f32.mrb[0].mxu0
          %v472 = vadd.f32 %v422, %v471
          %v473 = vpop.f32.mrb[0].mxu0
          %v474 = vpop.f32.mrb[0].mxu0
          %475 = vdwg.mxu0
          %v476 = vpack.c.bf16 %v470, %v470
          %v477 = vpack.c.bf16 %v472, %v472
          %v478 = vld [vmem:[#allocation2] sm:$0x3]
          %v481 = vrot.slane %v476, 1
          %v482 = vrot.slane %v477, 1
          %485 = vmatprep.subr.bf16.mxu0 %v482
          %486 = vmatpush1.bf16.xpose.msra.mxu0 %v481
          %487 = vmatprep.subr.bf16.mxu0 0
          %488 = vmatpush1.bf16.xpose.msra.mxu0 0
          %489 = vmatprep.subr.bf16.mxu0 0
          %490 = vmatpush1.bf16.xpose.msra.mxu0 0
          %491 = vmatprep.subr.bf16.mxu0 0
          %492 = vmatpush1.bf16.xpose.msra.mxu0 0
          %493 = vmatprep.subr.bf16.mxu0 0
          %494 = vmatpush1.bf16.xpose.msra.mxu0 0
          %495 = vmatprep.subr.bf16.mxu0 0
          %496 = vmatpush1.bf16.xpose.msra.mxu0 0
          %497 = vmatprep.subr.bf16.mxu0 0
          %498 = vmatpush1.bf16.xpose.msra.mxu0 0
          %499 = vmatprep.subr.bf16.mxu0 0
          %500 = vmatpush1.bf16.xpose.msra.mxu0 0
          %501 = vmatprep.subr.bf16.mxu0 0
          %502 = vmatpush1.bf16.xpose.msra.mxu0 0
          %503 = vmatprep.subr.bf16.mxu0 0
          %504 = vmatpush1.bf16.xpose.msra.mxu0 0
          %505 = vmatprep.subr.bf16.mxu0 0
          %506 = vmatpush1.bf16.xpose.msra.mxu0 0
          %507 = vmatprep.subr.bf16.mxu0 0
          %508 = vmatpush1.bf16.xpose.msra.mxu0 0
          %509 = vmatprep.subr.bf16.mxu0 0
          %510 = vmatpush1.bf16.xpose.msra.mxu0 0
          %511 = vmatprep.subr.bf16.mxu0 0
          %512 = vmatpush1.bf16.xpose.msra.mxu0 0
          %513 = vmatprep.subr.bf16.mxu0 0
          %514 = vmatpush1.bf16.xpose.msra.mxu0 0
          %515 = vmatprep.subr.bf16.mxu0 0
          %516 = vmatpush1.bf16.xpose.msra.mxu0 0
          %517 = vmatprep.mubr.bf16.mxu0 %v477
          %518 = vmatmul.mubr.bf16.gmra.mrb[0].mxu0 %v476
          %v519 = vpop.f32.mrb[0].mxu0
          %v520 = vadd.f32 0.0, %v519
          %v521 = vpop.f32.mrb[0].mxu0
          %v522 = vpop.f32.mrb[0].mxu0
          %v523 = vpop.f32.mrb[0].mxu0
          %524 = vdwg.mxu0
          %v525 = vadd.f32 %v478, %v520
          %vm526 = vcmask 9216
          %527 = vst.msk [vmem:[#allocation2] sm:$0x3] %vm526, %v525
        $region80: #{tpu_custom_call.1} parent=47 // pred_fallthru
          _
        %p528 = scmp.eq.s32.totalorder %s33, 1
        // Predicated region
        $region85: #{tpu_custom_call.1} parent=47 // pred_check
          %p529 = pneg %p528
        $region86: #{tpu_custom_call.1} parent=47 // pred_check_branch
          %531 = sbr.rel (%p529) target = $region88
        $region87: #{tpu_custom_call.1} parent=47 // pred_region
          %v532 = vld [vmem:[%s342] sm:$0xff]
          %v534 = vcombine.high %v532, %v532
          %v536 = vpack.c.bf16 %v532, %v532
          %v537 = vpack.c.bf16 %v534, %v534
          %v538 = vld [vmem:[#allocation9] sm:$0x1]
          %v539 = vld [vmem:[#allocation11] sm:$0x3]
          %541 = vset.pattern.permute.xlu0 0
          %542 = vperm.xlu0 %541, %v539
          %v543 = vpop.permute.xlu0 %542
          %vm545 = vcmask 31744
          %v547 = vsel %vm545, %v538, 0
          %vm549 = vcmask 1041408
          %v551 = vsel %vm549, %v536, 0
          %v554 = vsel %vm549, %v537, 0
          %556 = vmatprep.subr.bf16.mxu0 %v554
          %557 = vmatpush1.bf16.msra.mxu0 %v551
          %558 = vmatprep.subr.bf16.mxu0 0
          %559 = vmatpush1.bf16.msra.mxu0 0
          %560 = vmatprep.subr.bf16.mxu0 0
          %561 = vmatpush1.bf16.msra.mxu0 0
          %562 = vmatprep.subr.bf16.mxu0 0
          %563 = vmatpush1.bf16.msra.mxu0 0
          %564 = vmatprep.subr.bf16.mxu0 0
          %565 = vmatpush1.bf16.msra.mxu0 0
          %566 = vmatprep.subr.bf16.mxu0 0
          %567 = vmatpush1.bf16.msra.mxu0 0
          %568 = vmatprep.subr.bf16.mxu0 0
          %569 = vmatpush1.bf16.msra.mxu0 0
          %570 = vmatprep.subr.bf16.mxu0 0
          %571 = vmatpush1.bf16.msra.mxu0 0
          %572 = vmatprep.subr.bf16.mxu0 0
          %573 = vmatpush1.bf16.msra.mxu0 0
          %574 = vmatprep.subr.bf16.mxu0 0
          %575 = vmatpush1.bf16.msra.mxu0 0
          %576 = vmatprep.subr.bf16.mxu0 0
          %577 = vmatpush1.bf16.msra.mxu0 0
          %578 = vmatprep.subr.bf16.mxu0 0
          %579 = vmatpush1.bf16.msra.mxu0 0
          %580 = vmatprep.subr.bf16.mxu0 0
          %581 = vmatpush1.bf16.msra.mxu0 0
          %582 = vmatprep.subr.bf16.mxu0 0
          %583 = vmatpush1.bf16.msra.mxu0 0
          %584 = vmatprep.subr.bf16.mxu0 0
          %585 = vmatpush1.bf16.msra.mxu0 0
          %586 = vmatprep.subr.bf16.mxu0 0
          %587 = vmatpush1.bf16.msra.mxu0 0
          %588 = vmatprep.mubr.bf16.mxu0 0
          %589 = vmatmul.mubr.bf16.gmra.mrb[0].mxu0 %v547
          %v590 = vpop.f32.mrb[0].mxu0
          %v591 = vadd.f32 %v543, %v590
          %v592 = vpop.f32.mrb[0].mxu0
          %v593 = vadd.f32 %v543, %v592
          %v594 = vpop.f32.mrb[0].mxu0
          %v595 = vpop.f32.mrb[0].mxu0
          %596 = vdwg.mxu0
          %v597 = vpack.c.bf16 %v591, %v591
          %v598 = vpack.c.bf16 %v593, %v593
          %v599 = vld [vmem:[#allocation2] sm:$0x3]
          %v600 = vpack.c.bf16 %v599, %v599
          %vm601 = vcmask 15360
          %v603 = vsel %vm601, %v600, 0
          %vm605 = vcmask 1040384
          %v607 = vsel %vm605, %v597, 0
          %v610 = vsel %vm605, %v598, 0
          %612 = vmatprep.subr.bf16.mxu0 %v610
          %613 = vmatpush1.bf16.msra.mxu0 %v607
          %614 = vmatprep.subr.bf16.mxu0 0
          %615 = vmatpush1.bf16.msra.mxu0 0
          %616 = vmatprep.subr.bf16.mxu0 0
          %617 = vmatpush1.bf16.msra.mxu0 0
          %618 = vmatprep.subr.bf16.mxu0 0
          %619 = vmatpush1.bf16.msra.mxu0 0
          %620 = vmatprep.subr.bf16.mxu0 0
          %621 = vmatpush1.bf16.msra.mxu0 0
          %622 = vmatprep.subr.bf16.mxu0 0
          %623 = vmatpush1.bf16.msra.mxu0 0
          %624 = vmatprep.subr.bf16.mxu0 0
          %625 = vmatpush1.bf16.msra.mxu0 0
          %626 = vmatprep.subr.bf16.mxu0 0
          %627 = vmatpush1.bf16.msra.mxu0 0
          %628 = vmatprep.subr.bf16.mxu0 0
          %629 = vmatpush1.bf16.msra.mxu0 0
          %630 = vmatprep.subr.bf16.mxu0 0
          %631 = vmatpush1.bf16.msra.mxu0 0
          %632 = vmatprep.subr.bf16.mxu0 0
          %633 = vmatpush1.bf16.msra.mxu0 0
          %634 = vmatprep.subr.bf16.mxu0 0
          %635 = vmatpush1.bf16.msra.mxu0 0
          %636 = vmatprep.subr.bf16.mxu0 0
          %637 = vmatpush1.bf16.msra.mxu0 0
          %638 = vmatprep.subr.bf16.mxu0 0
          %639 = vmatpush1.bf16.msra.mxu0 0
          %640 = vmatprep.subr.bf16.mxu0 0
          %641 = vmatpush1.bf16.msra.mxu0 0
          %642 = vmatprep.subr.bf16.mxu0 0
          %643 = vmatpush1.bf16.msra.mxu0 0
          %644 = vmatprep.mubr.bf16.mxu0 0
          %645 = vmatmul.mubr.bf16.gmra.mrb[0].mxu0 %v603
          %v646 = vpop.f32.mrb[0].mxu0
          %v647 = vadd.f32 0.0, %v646
          %v648 = vpop.f32.mrb[0].mxu0
          %v649 = vadd.f32 0.0, %v648
          %v650 = vpop.f32.mrb[0].mxu0
          %v651 = vpop.f32.mrb[0].mxu0
          %652 = vdwg.mxu0
          %v653 = vld [vmem:[#allocation12] sm:$0x3]
          %v654 = vpack.c.bf16 %v647, %v647
          %v655 = vpack.c.bf16 %v649, %v649
          %v656 = vld [vmem:[#allocation14] sm:$0xf]
          %658 = vset.pattern.permute.xlu0 0
          %659 = vperm.xlu0 %658, %v656
          %v660 = vpop.permute.xlu0 %659
          %v663 = vsel %vm601, %v653, 0
          %v666 = vsel %vm605, %v654, 0
          %v669 = vsel %vm605, %v655, 0
          %671 = vmatprep.subr.bf16.mxu0 %v669
          %672 = vmatpush1.bf16.msra.mxu0 %v666
          %673 = vmatprep.subr.bf16.mxu0 0
          %674 = vmatpush1.bf16.msra.mxu0 0
          %675 = vmatprep.subr.bf16.mxu0 0
          %676 = vmatpush1.bf16.msra.mxu0 0
          %677 = vmatprep.subr.bf16.mxu0 0
          %678 = vmatpush1.bf16.msra.mxu0 0
          %679 = vmatprep.subr.bf16.mxu0 0
          %680 = vmatpush1.bf16.msra.mxu0 0
          %681 = vmatprep.subr.bf16.mxu0 0
          %682 = vmatpush1.bf16.msra.mxu0 0
          %683 = vmatprep.subr.bf16.mxu0 0
          %684 = vmatpush1.bf16.msra.mxu0 0
          %685 = vmatprep.subr.bf16.mxu0 0
          %686 = vmatpush1.bf16.msra.mxu0 0
          %687 = vmatprep.subr.bf16.mxu0 0
          %688 = vmatpush1.bf16.msra.mxu0 0
          %689 = vmatprep.subr.bf16.mxu0 0
          %690 = vmatpush1.bf16.msra.mxu0 0
          %691 = vmatprep.subr.bf16.mxu0 0
          %692 = vmatpush1.bf16.msra.mxu0 0
          %693 = vmatprep.subr.bf16.mxu0 0
          %694 = vmatpush1.bf16.msra.mxu0 0
          %695 = vmatprep.subr.bf16.mxu0 0
          %696 = vmatpush1.bf16.msra.mxu0 0
          %697 = vmatprep.subr.bf16.mxu0 0
          %698 = vmatpush1.bf16.msra.mxu0 0
          %699 = vmatprep.subr.bf16.mxu0 0
          %700 = vmatpush1.bf16.msra.mxu0 0
          %701 = vmatprep.subr.bf16.mxu0 0
          %702 = vmatpush1.bf16.msra.mxu0 0
          %703 = vmatprep.mubr.bf16.mxu0 0
          %704 = vmatmul.mubr.bf16.gmra.mrb[0].mxu0 %v663
          %v705 = vpop.f32.mrb[0].mxu0
          %v706 = vadd.f32 %v660, %v705
          %v707 = vpop.f32.mrb[0].mxu0
          %v708 = vadd.f32 %v660, %v707
          %v709 = vpop.f32.mrb[0].mxu0
          %v710 = vpop.f32.mrb[0].mxu0
          %711 = vdwg.mxu0
          %v712 = vadd.f32 %v706, %v532
          %v713 = vadd.f32 %v708, %v534
          %v716 = vcombine.low %v712, %v713
          %718 = vst [vmem:[%s396] sm:$0xff] %v716
        $region88: #{tpu_custom_call.1} parent=47 // pred_fallthru
          _
        %s719 = sand.u32 %s212, 1
        %s720 = scalar_lea.sflag [#allocation5], %s719
        %s721 = sand.u32 %s212, 1
        %s722 = smul.addr %s721, 8
        %s723 = scalar_lea.vmem [#allocation15], %s722
        // Predicated region
        $region89: #{tpu_custom_call.1} parent=47 // pred_check
          %p724 = pneg %p222
        $region90: #{tpu_custom_call.1} parent=47 // pred_check_branch
          %726 = sbr.rel (%p724) target = $region92
        $region91: #{tpu_custom_call.1} parent=47 // pred_region
          %s727 = smul.u32 %s34, %s33
          %s728 = smul.u32 2, %s727
          %s730 = ssub.s32 128, 128
          %731 = vsyncadd %s720, %s730
          %s732 = smul.addr %s32, 2
          %s733 = sadd.s32 %s728, %s732
          %s734 = smul.addr %s733, 64
          %s735 = scalar_lea.hbm %s7, %s734
          %s737 = sshll.u32 %s723, 4
          %s738 = int_to_ptr.vmem [resolvable:$true] %s737
          %740 = dma.vmem_to_hbm [thread:$0]  %s738, 128, %s735, %s720
        $region92: #{tpu_custom_call.1} parent=47 // pred_fallthru
          _
      $region48: #{tpu_custom_call.1} parent=5 // pred_fallthru
        _
      %p741 = scmp.le.s32.totalorder 2, %s22
      // Predicated region
      $region93: #{tpu_custom_call.1} parent=5 // pred_check
        %p742 = pneg %p741
      $region94: #{tpu_custom_call.1} parent=5 // pred_check_branch
        %744 = sbr.rel (%p742) target = $region96
      $region95: #{tpu_custom_call.1} parent=5 // pred_region
        %s745 = ssub.s32 %s22, 2
        // Predicated region
        $region97: #{tpu_custom_call.1} parent=95 // pred_check
          %p746 = pneg %p228
        $region98: #{tpu_custom_call.1} parent=95 // pred_check_branch
          %748 = sbr.rel (%p746) target = $region100
        $region99: #{tpu_custom_call.1} parent=95 // pred_region
          %s749 = sand.u32 %s213, 1
          %s750 = scalar_lea.sflag [#allocation5], %s749
          %s751 = sand.u32 %s213, 1
          %s752 = smul.addr %s751, 8
          %s753 = scalar_lea.vmem [#allocation15], %s752
          %754 = dma.done %s750, 128
        $region100: #{tpu_custom_call.1} parent=95 // pred_fallthru
          _
      $region96: #{tpu_custom_call.1} parent=5 // pred_fallthru
        _
    $region6: #{tpu_custom_call.1} parent=1 // loop_footer
      %s26 = sadd.s32 1, %s22
    $region7: #{tpu_custom_call.1} parent=1 // loop_footer_branch
      %21 = sbr.rel target = $region3
    $region8: #{tpu_custom_call.1} parent=1 // loop_exit
      _
    %755 = vsyncpa [#allocation4], 1
    %s756 = scalar_lea.sflag [#allocation4], 1
    %757 = vsyncpa %s756, 1
    %758 = vsyncpa [#allocation7], 1
    %759 = vsyncpa [#allocation10], 1
    %760 = vsyncpa [#allocation13], 1
    %761 = vsyncpa [#allocation5], 1
    %s762 = scalar_lea.sflag [#allocation5], 1
    %763 = vsyncpa %s762, 1

</llo_original>
